<compile_context>
chip_gen: v7x
topology: tpu7x:2x2x1
jax: 0.10.0
libtpu: 0.0.40
codegen_flags: <defaults>
</compile_context>

<pallas_src>
import math

import jax
import jax.numpy as jnp
from jax import lax
from jax.experimental import pallas as pl
from jax.experimental.pallas import tpu as pltpu

_LN_EPS = 1e-5  # torch.nn.LayerNorm default eps


def _round_up(n: int, m: int) -> int:
    return ((n + m - 1) // m) * m


def _layernorm_f32(h, gamma, beta):
    # h: (tm, D) float32; gamma/beta: (1, D) float32.  rsqrt -> EUP slot.
    mu = jnp.mean(h, axis=-1, keepdims=True)
    xc = h - mu
    var = jnp.mean(xc * xc, axis=-1, keepdims=True)
    return xc * lax.rsqrt(var + _LN_EPS) * gamma + beta


def _cls_decoder_kernel(
    x_ref,
    w1_ref, b1_ref, g1_ref, be1_ref,
    w2_ref, b2_ref, g2_ref, be2_ref,
    wo_ref, bo_ref,
    o_ref,
):
    # x_ref: (tm, D); w*_ref: (D, D) bf16 in (in, out) layout; wo_ref: (D, Cp) bf16.
    # bf16 operands into the MXU, f32 accumulation + f32 LayerNorm math.
    x = x_ref[...].astype(jnp.bfloat16)

    # Block 1: Linear -> ReLU -> LayerNorm.
    h = jnp.dot(x, w1_ref[...], preferred_element_type=jnp.float32)
    h = jnp.maximum(h + b1_ref[...], 0.0)
    h = _layernorm_f32(h, g1_ref[...], be1_ref[...])

    # Block 2: Linear -> ReLU -> LayerNorm.
    h = jnp.dot(h.astype(jnp.bfloat16), w2_ref[...],
                preferred_element_type=jnp.float32)
    h = jnp.maximum(h + b2_ref[...], 0.0)
    h = _layernorm_f32(h, g2_ref[...], be2_ref[...])

    # Output projection into the lane-dense (multiple-of-128) padded class dim.
    o = jnp.dot(h.astype(jnp.bfloat16), wo_ref[...],
                preferred_element_type=jnp.float32)
    o_ref[...] = (o + bo_ref[...]).astype(o_ref.dtype)


def prepare_params(params: dict, *, weight_dtype=jnp.bfloat16) -> dict:
    """One-time parameter preparation (hoisted out of the per-call wrapper).

    Input `params` holds PyTorch-layout weights:
      w1, w2 : (d_model, d_model)   (out, in)
      b1, b2 : (d_model,)
      g1, beta1, g2, beta2 : (d_model,)   LayerNorm affine params
      wo : (n_cls, d_model), bo : (n_cls,)
    """
    d_model = params["w1"].shape[0]
    n_cls = params["wo"].shape[0]
    c_padded = _round_up(max(n_cls, 1), 128)  # lane-dense output columns

    as_row = lambda v: v.astype(jnp.float32)[None, :]

    # Host-side transpose to (in, out): no XLU transpose inside the kernel.
    w1 = params["w1"].T.astype(weight_dtype)
    w2 = params["w2"].T.astype(weight_dtype)
    wo = jnp.zeros((d_model, c_padded), weight_dtype).at[:, :n_cls].set(
        params["wo"].T.astype(weight_dtype))
    bo = jnp.zeros((1, c_padded), jnp.float32).at[:, :n_cls].set(
        params["bo"].astype(jnp.float32)[None, :])

    return dict(
        d_model=d_model, n_cls=n_cls, c_padded=c_padded,
        w1=w1, b1=as_row(params["b1"]), g1=as_row(params["g1"]),
        be1=as_row(params["beta1"]),
        w2=w2, b2=as_row(params["b2"]), g2=as_row(params["g2"]),
        be2=as_row(params["beta2"]),
        wo=wo, bo=bo,
    )


def _choose_tm(B: int, block_b: int) -> int:
    """Batch-tile size: big (amortize per-step overhead) but >=2 grid steps
    when possible so the 'parallel' axis spans both v7x TensorCores."""
    if B <= 8:
        return _round_up(B, 8)
    return max(8, min(block_b, _round_up(pl.cdiv(B, 2), 8)))


def _vmem_limit_bytes(tm: int, D: int, Cp: int, single_buffer: bool) -> int:
    """Explicit scoped-VMEM budget (v5e default is only 16 MiB)."""
    w_bufs = 1 if single_buffer else 2
    weights = w_bufs * (2 * D * D + D * Cp) * 2            # bf16 weights
    smalls = w_bufs * (6 * D + Cp) * 4                     # biases / LN params
    io_tiles = 2 * (tm * D + tm * Cp) * 4                  # double-buffered x / out
    act = 4 * tm * D * 4                                   # in-kernel intermediates
    est = weights + smalls + io_tiles + act
    return int(min(64 * 2**20, max(32 * 2**20, 2 * est)))


def _build_specs(tm: int, D: int, Cp: int, single_buffer: bool):
    const_kw = {"pipeline_mode": pl.Buffered(1)} if single_buffer else {}

    def const(shape):
        # Grid-invariant operand: constant index_map, optionally single-buffered.
        return pl.BlockSpec(shape, lambda i: (0, 0), **const_kw)

    in_specs = [
        pl.BlockSpec((tm, D), lambda i: (i, 0)),   # x tile (pipelined)
        const((D, D)),   # w1
        const((1, D)),   # b1
        const((1, D)),   # gamma1
        const((1, D)),   # beta1
        const((D, D)),   # w2
        const((1, D)),   # b2
        const((1, D)),   # gamma2
        const((1, D)),   # beta2
        const((D, Cp)),  # wo (lane-padded)
        const((1, Cp)),  # bo (lane-padded)
    ]
    out_specs = pl.BlockSpec((tm, Cp), lambda i: (i, 0))
    return in_specs, out_specs


def cls_decoder(x: jax.Array, prepared: dict, *, block_b: int = 512,
                out_dtype=None) -> jax.Array:
    """Pallas equivalent of ClsDecoder(d_model, n_cls, nlayers=3, nn.ReLU)(x).

    `prepared` is the output of `prepare_params` (call once, reuse)."""
    B, D = x.shape
    assert D == prepared["d_model"]
    n_cls, Cp = prepared["n_cls"], prepared["c_padded"]
    out_dtype = x.dtype if out_dtype is None else out_dtype

    tm = _choose_tm(B, block_b)
    grid = (pl.cdiv(B, tm),)   # no wrapper-side batch padding: edge block masked

    operands = (
        x,
        prepared["w1"], prepared["b1"], prepared["g1"], prepared["be1"],
        prepared["w2"], prepared["b2"], prepared["g2"], prepared["be2"],
        prepared["wo"], prepared["bo"],
    )

    out = None
    for single_buffer in (True, False):
        try:
            in_specs, out_specs = _build_specs(tm, D, Cp, single_buffer)
            out = pl.pallas_call(
                _cls_decoder_kernel,
                out_shape=jax.ShapeDtypeStruct((B, Cp), out_dtype),
                grid=grid,
                in_specs=in_specs,
                out_specs=out_specs,
                compiler_params=pltpu.CompilerParams(
                    dimension_semantics=("parallel",),
                    vmem_limit_bytes=_vmem_limit_bytes(tm, D, Cp, single_buffer),
                ),
            )(*operands)
            break
        except Exception:
            # Fallback: if this JAX build rejects Buffered(1) single-buffering,
            # retry with default double-buffering (semantics identical).
            if not single_buffer:
                raise

    return out[:, :n_cls]


def _init_params(key, d_model: int, n_cls: int) -> dict:
    """Deterministic params mimicking nn.Linear's uniform(-1/sqrt(fan_in)) init
    and nn.LayerNorm's (ones, zeros) affine init."""
    ks = jax.random.split(key, 6)
    lim = 1.0 / math.sqrt(d_model)
    u = lambda k, shape: jax.random.uniform(k, shape, jnp.float32, -lim, lim)
    return dict(
        w1=u(ks[0], (d_model, d_model)), b1=u(ks[1], (d_model,)),
        g1=jnp.ones((d_model,), jnp.float32), beta1=jnp.zeros((d_model,), jnp.float32),
        w2=u(ks[2], (d_model, d_model)), b2=u(ks[3], (d_model,)),
        g2=jnp.ones((d_model,), jnp.float32), beta2=jnp.zeros((d_model,), jnp.float32),
        wo=u(ks[4], (n_cls, d_model)), bo=u(ks[5], (n_cls,)),
    )


def _reference(x, p):
    # Pure-JAX f32 reference mirroring the PyTorch ClsDecoder forward.
    h = x.astype(jnp.float32)
    for w, b, g, be in ((p["w1"], p["b1"], p["g1"], p["beta1"]),
                        (p["w2"], p["b2"], p["g2"], p["beta2"])):
        h = h @ w.T + b
        h = jnp.maximum(h, 0.0)
        mu = jnp.mean(h, axis=-1, keepdims=True)
        var = jnp.mean((h - mu) ** 2, axis=-1, keepdims=True)
        h = (h - mu) / jnp.sqrt(var + _LN_EPS) * g + be
    return h @ p["wo"].T + p["bo"]


if __name__ == "__main__":
    key = jax.random.PRNGKey(0)
    kx, kp = jax.random.split(key)

    B, d_model, n_cls = 8, 32, 4  # small shapes consistent with ClsDecoder

    x = jax.random.normal(kx, (B, d_model), dtype=jnp.float32)
    params = _init_params(kp, d_model, n_cls)

    prepared = prepare_params(params)          # one-time param prep
    out = cls_decoder(x, prepared)
    out = jax.block_until_ready(out)

    ref = _reference(x, params)
    assert out.shape == (B, n_cls)
    # bf16 matmul path -> tolerance sized for bf16 rounding (f32 accumulation).
    assert jnp.allclose(out.astype(jnp.float32), ref, atol=5e-2, rtol=5e-2), (
        f"max abs err {jnp.max(jnp.abs(out.astype(jnp.float32) - ref))}"
    )

    print("KERNEL_OK")
</pallas_src>

<mosaic_0001>
module attributes {stable_mosaic.version = 11 : i64} {
  func.func @_cls_decoder_kernel(%arg0: i32, %arg1: memref<8x32xf32, #tpu.memory_space<vmem>>, %arg2: memref<32x32xbf16, #tpu.memory_space<vmem>>, %arg3: memref<1x32xf32, #tpu.memory_space<vmem>>, %arg4: memref<1x32xf32, #tpu.memory_space<vmem>>, %arg5: memref<1x32xf32, #tpu.memory_space<vmem>>, %arg6: memref<32x32xbf16, #tpu.memory_space<vmem>>, %arg7: memref<1x32xf32, #tpu.memory_space<vmem>>, %arg8: memref<1x32xf32, #tpu.memory_space<vmem>>, %arg9: memref<1x32xf32, #tpu.memory_space<vmem>>, %arg10: memref<32x128xbf16, #tpu.memory_space<vmem>>, %arg11: memref<1x128xf32, #tpu.memory_space<vmem>>, %arg12: memref<8x128xf32, #tpu.memory_space<vmem>>) attributes {dimension_semantics = [#tpu.dimension_semantics<parallel>], iteration_bounds = array<i64: 1>, scalar_prefetch = 0 : i64, scratch_operands = 0 : i64, tpu.core_type = #tpu.core_type<tc>, window_params = [{transform_indices = @transform_0, window_bounds = array<i64: 8, 32>}, {pipeline_mode = #tpu.pipeline_mode<synchronous>, transform_indices = @transform_1, window_bounds = array<i64: 32, 32>}, {pipeline_mode = #tpu.pipeline_mode<synchronous>, transform_indices = @transform_2, window_bounds = array<i64: 1, 32>}, {pipeline_mode = #tpu.pipeline_mode<synchronous>, transform_indices = @transform_3, window_bounds = array<i64: 1, 32>}, {pipeline_mode = #tpu.pipeline_mode<synchronous>, transform_indices = @transform_4, window_bounds = array<i64: 1, 32>}, {pipeline_mode = #tpu.pipeline_mode<synchronous>, transform_indices = @transform_5, window_bounds = array<i64: 32, 32>}, {pipeline_mode = #tpu.pipeline_mode<synchronous>, transform_indices = @transform_6, window_bounds = array<i64: 1, 32>}, {pipeline_mode = #tpu.pipeline_mode<synchronous>, transform_indices = @transform_7, window_bounds = array<i64: 1, 32>}, {pipeline_mode = #tpu.pipeline_mode<synchronous>, transform_indices = @transform_8, window_bounds = array<i64: 1, 32>}, {pipeline_mode = #tpu.pipeline_mode<synchronous>, transform_indices = @transform_9, window_bounds = array<i64: 32, 128>}, {pipeline_mode = #tpu.pipeline_mode<synchronous>, transform_indices = @transform_10, window_bounds = array<i64: 1, 128>}, {transform_indices = @transform_11, window_bounds = array<i64: 8, 128>}]} {
    %c0 = arith.constant 0 : index
    %c0_0 = arith.constant 0 : index
    %0 = vector.load %arg1[%c0, %c0_0] : memref<8x32xf32, #tpu.memory_space<vmem>>, vector<8x32xf32>
    %1 = arith.truncf %0 : vector<8x32xf32> to vector<8x32xbf16>
    %c0_1 = arith.constant 0 : index
    %c0_2 = arith.constant 0 : index
    %2 = vector.load %arg2[%c0_1, %c0_2] : memref<32x32xbf16, #tpu.memory_space<vmem>>, vector<32x32xbf16>
    %cst = arith.constant dense<0.000000e+00> : vector<8x32xf32>
    %3 = tpu.matmul %1, %2, %cst {dimension_numbers = #tpu.dot_dimension_numbers<[1], [0], [0], [1], [0, 0, 1, 1], [], []>} : vector<8x32xbf16>, vector<32x32xbf16>, vector<8x32xf32> -> vector<8x32xf32>
    %c0_3 = arith.constant 0 : index
    %c0_4 = arith.constant 0 : index
    %4 = vector.load %arg3[%c0_3, %c0_4] : memref<1x32xf32, #tpu.memory_space<vmem>>, vector<1x32xf32>
    %5 = vector.broadcast %4 : vector<1x32xf32> to vector<8x32xf32>
    %6 = arith.addf %3, %5 : vector<8x32xf32>
    %cst_5 = arith.constant 0.000000e+00 : f32
    %7 = vector.broadcast %cst_5 : f32 to vector<8x32xf32>
    %8 = arith.maximumf %6, %7 : vector<8x32xf32>
    %c0_6 = arith.constant 0 : index
    %c0_7 = arith.constant 0 : index
    %9 = vector.load %arg4[%c0_6, %c0_7] : memref<1x32xf32, #tpu.memory_space<vmem>>, vector<1x32xf32>
    %c0_8 = arith.constant 0 : index
    %c0_9 = arith.constant 0 : index
    %10 = vector.load %arg5[%c0_8, %c0_9] : memref<1x32xf32, #tpu.memory_space<vmem>>, vector<1x32xf32>
    %cst_10 = arith.constant dense<0.000000e+00> : vector<8xf32>
    %11 = vector.multi_reduction <add>, %8, %cst_10 [1] : vector<8x32xf32> to vector<8xf32>
    %12 = vector.shape_cast %11 : vector<8xf32> to vector<8x1xf32>
    %cst_11 = arith.constant 3.200000e+01 : f32
    %13 = vector.broadcast %cst_11 : f32 to vector<8x1xf32>
    %14 = arith.divf %12, %13 : vector<8x1xf32>
    %15 = vector.broadcast %14 : vector<8x1xf32> to vector<8x32xf32>
    %16 = arith.subf %8, %15 : vector<8x32xf32>
    %17 = arith.mulf %16, %16 : vector<8x32xf32>
    %cst_12 = arith.constant dense<0.000000e+00> : vector<8xf32>
    %18 = vector.multi_reduction <add>, %17, %cst_12 [1] : vector<8x32xf32> to vector<8xf32>
    %19 = vector.shape_cast %18 : vector<8xf32> to vector<8x1xf32>
    %cst_13 = arith.constant 3.200000e+01 : f32
    %20 = vector.broadcast %cst_13 : f32 to vector<8x1xf32>
    %21 = arith.divf %19, %20 : vector<8x1xf32>
    %cst_14 = arith.constant 9.99999974E-6 : f32
    %22 = vector.broadcast %cst_14 : f32 to vector<8x1xf32>
    %23 = arith.addf %21, %22 : vector<8x1xf32>
    %24 = math.rsqrt %23 : vector<8x1xf32>
    %25 = vector.broadcast %24 : vector<8x1xf32> to vector<8x32xf32>
    %26 = arith.mulf %16, %25 : vector<8x32xf32>
    %27 = vector.broadcast %9 : vector<1x32xf32> to vector<8x32xf32>
    %28 = arith.mulf %26, %27 : vector<8x32xf32>
    %29 = vector.broadcast %10 : vector<1x32xf32> to vector<8x32xf32>
    %30 = arith.addf %28, %29 : vector<8x32xf32>
    %31 = arith.truncf %30 : vector<8x32xf32> to vector<8x32xbf16>
    %c0_15 = arith.constant 0 : index
    %c0_16 = arith.constant 0 : index
    %32 = vector.load %arg6[%c0_15, %c0_16] : memref<32x32xbf16, #tpu.memory_space<vmem>>, vector<32x32xbf16>
    %cst_17 = arith.constant dense<0.000000e+00> : vector<8x32xf32>
    %33 = tpu.matmul %31, %32, %cst_17 {dimension_numbers = #tpu.dot_dimension_numbers<[1], [0], [0], [1], [0, 0, 1, 1], [], []>} : vector<8x32xbf16>, vector<32x32xbf16>, vector<8x32xf32> -> vector<8x32xf32>
    %c0_18 = arith.constant 0 : index
    %c0_19 = arith.constant 0 : index
    %34 = vector.load %arg7[%c0_18, %c0_19] : memref<1x32xf32, #tpu.memory_space<vmem>>, vector<1x32xf32>
    %35 = vector.broadcast %34 : vector<1x32xf32> to vector<8x32xf32>
    %36 = arith.addf %33, %35 : vector<8x32xf32>
    %cst_20 = arith.constant 0.000000e+00 : f32
    %37 = vector.broadcast %cst_20 : f32 to vector<8x32xf32>
    %38 = arith.maximumf %36, %37 : vector<8x32xf32>
    %c0_21 = arith.constant 0 : index
    %c0_22 = arith.constant 0 : index
    %39 = vector.load %arg8[%c0_21, %c0_22] : memref<1x32xf32, #tpu.memory_space<vmem>>, vector<1x32xf32>
    %c0_23 = arith.constant 0 : index
    %c0_24 = arith.constant 0 : index
    %40 = vector.load %arg9[%c0_23, %c0_24] : memref<1x32xf32, #tpu.memory_space<vmem>>, vector<1x32xf32>
    %cst_25 = arith.constant dense<0.000000e+00> : vector<8xf32>
    %41 = vector.multi_reduction <add>, %38, %cst_25 [1] : vector<8x32xf32> to vector<8xf32>
    %42 = vector.shape_cast %41 : vector<8xf32> to vector<8x1xf32>
    %cst_26 = arith.constant 3.200000e+01 : f32
    %43 = vector.broadcast %cst_26 : f32 to vector<8x1xf32>
    %44 = arith.divf %42, %43 : vector<8x1xf32>
    %45 = vector.broadcast %44 : vector<8x1xf32> to vector<8x32xf32>
    %46 = arith.subf %38, %45 : vector<8x32xf32>
    %47 = arith.mulf %46, %46 : vector<8x32xf32>
    %cst_27 = arith.constant dense<0.000000e+00> : vector<8xf32>
    %48 = vector.multi_reduction <add>, %47, %cst_27 [1] : vector<8x32xf32> to vector<8xf32>
    %49 = vector.shape_cast %48 : vector<8xf32> to vector<8x1xf32>
    %cst_28 = arith.constant 3.200000e+01 : f32
    %50 = vector.broadcast %cst_28 : f32 to vector<8x1xf32>
    %51 = arith.divf %49, %50 : vector<8x1xf32>
    %cst_29 = arith.constant 9.99999974E-6 : f32
    %52 = vector.broadcast %cst_29 : f32 to vector<8x1xf32>
    %53 = arith.addf %51, %52 : vector<8x1xf32>
    %54 = math.rsqrt %53 : vector<8x1xf32>
    %55 = vector.broadcast %54 : vector<8x1xf32> to vector<8x32xf32>
    %56 = arith.mulf %46, %55 : vector<8x32xf32>
    %57 = vector.broadcast %39 : vector<1x32xf32> to vector<8x32xf32>
    %58 = arith.mulf %56, %57 : vector<8x32xf32>
    %59 = vector.broadcast %40 : vector<1x32xf32> to vector<8x32xf32>
    %60 = arith.addf %58, %59 : vector<8x32xf32>
    %61 = arith.truncf %60 : vector<8x32xf32> to vector<8x32xbf16>
    %c0_30 = arith.constant 0 : index
    %c0_31 = arith.constant 0 : index
    %62 = vector.load %arg10[%c0_30, %c0_31] : memref<32x128xbf16, #tpu.memory_space<vmem>>, vector<32x128xbf16>
    %cst_32 = arith.constant dense<0.000000e+00> : vector<8x128xf32>
    %63 = tpu.matmul %61, %62, %cst_32 {dimension_numbers = #tpu.dot_dimension_numbers<[1], [0], [0], [1], [0, 0, 1, 1], [], []>} : vector<8x32xbf16>, vector<32x128xbf16>, vector<8x128xf32> -> vector<8x128xf32>
    %c0_33 = arith.constant 0 : index
    %c0_34 = arith.constant 0 : index
    %64 = vector.load %arg11[%c0_33, %c0_34] : memref<1x128xf32, #tpu.memory_space<vmem>>, vector<1x128xf32>
    %65 = vector.broadcast %64 : vector<1x128xf32> to vector<8x128xf32>
    %66 = arith.addf %63, %65 : vector<8x128xf32>
    %c0_35 = arith.constant 0 : index
    %c0_36 = arith.constant 0 : index
    %67 = vector.load %arg12[%c0_35, %c0_36] : memref<8x128xf32, #tpu.memory_space<vmem>>, vector<8x128xf32>
    tpu.vector_store %arg12[%c0_35, %c0_36], %66 {strides = array<i32>} : memref<8x128xf32, #tpu.memory_space<vmem>>, vector<8x128xf32>,
    return
  }
  func.func @transform_0(%arg0: i32) -> (i32, i32) {
    %c0_i32 = arith.constant 0 : i32
    %c0_i32_0 = arith.constant 0 : i32
    return %arg0, %c0_i32 : i32, i32
  }
  func.func @transform_1(%arg0: i32) -> (i32, i32) {
    %c0_i32 = arith.constant 0 : i32
    %c0_i32_0 = arith.constant 0 : i32
    %c0_i32_1 = arith.constant 0 : i32
    return %c0_i32, %c0_i32_0 : i32, i32
  }
  func.func @transform_2(%arg0: i32) -> (i32, i32) {
    %c0_i32 = arith.constant 0 : i32
    %c0_i32_0 = arith.constant 0 : i32
    %c0_i32_1 = arith.constant 0 : i32
    return %c0_i32, %c0_i32_0 : i32, i32
  }
  func.func @transform_3(%arg0: i32) -> (i32, i32) {
    %c0_i32 = arith.constant 0 : i32
    %c0_i32_0 = arith.constant 0 : i32
    %c0_i32_1 = arith.constant 0 : i32
    return %c0_i32, %c0_i32_0 : i32, i32
  }
  func.func @transform_4(%arg0: i32) -> (i32, i32) {
    %c0_i32 = arith.constant 0 : i32
    %c0_i32_0 = arith.constant 0 : i32
    %c0_i32_1 = arith.constant 0 : i32
    return %c0_i32, %c0_i32_0 : i32, i32
  }
  func.func @transform_5(%arg0: i32) -> (i32, i32) {
    %c0_i32 = arith.constant 0 : i32
    %c0_i32_0 = arith.constant 0 : i32
    %c0_i32_1 = arith.constant 0 : i32
    return %c0_i32, %c0_i32_0 : i32, i32
  }
  func.func @transform_6(%arg0: i32) -> (i32, i32) {
    %c0_i32 = arith.constant 0 : i32
    %c0_i32_0 = arith.constant 0 : i32
    %c0_i32_1 = arith.constant 0 : i32
    return %c0_i32, %c0_i32_0 : i32, i32
  }
  func.func @transform_7(%arg0: i32) -> (i32, i32) {
    %c0_i32 = arith.constant 0 : i32
    %c0_i32_0 = arith.constant 0 : i32
    %c0_i32_1 = arith.constant 0 : i32
    return %c0_i32, %c0_i32_0 : i32, i32
  }
  func.func @transform_8(%arg0: i32) -> (i32, i32) {
    %c0_i32 = arith.constant 0 : i32
    %c0_i32_0 = arith.constant 0 : i32
    %c0_i32_1 = arith.constant 0 : i32
    return %c0_i32, %c0_i32_0 : i32, i32
  }
  func.func @transform_9(%arg0: i32) -> (i32, i32) {
    %c0_i32 = arith.constant 0 : i32
    %c0_i32_0 = arith.constant 0 : i32
    %c0_i32_1 = arith.constant 0 : i32
    return %c0_i32, %c0_i32_0 : i32, i32
  }
  func.func @transform_10(%arg0: i32) -> (i32, i32) {
    %c0_i32 = arith.constant 0 : i32
    %c0_i32_0 = arith.constant 0 : i32
    %c0_i32_1 = arith.constant 0 : i32
    return %c0_i32, %c0_i32_0 : i32, i32
  }
  func.func @transform_11(%arg0: i32) -> (i32, i32) {
    %c0_i32 = arith.constant 0 : i32
    %c0_i32_0 = arith.constant 0 : i32
    return %arg0, %c0_i32 : i32, i32
  }
}

module attributes {stable_mosaic.version = 11 : i64} {
  func.func @_cls_decoder_kernel(%arg0: i32, %arg1: memref<8x32xf32, #tpu.memory_space<vmem>>, %arg2: memref<32x32xbf16, #tpu.memory_space<vmem>>, %arg3: memref<1x32xf32, #tpu.memory_space<vmem>>, %arg4: memref<1x32xf32, #tpu.memory_space<vmem>>, %arg5: memref<1x32xf32, #tpu.memory_space<vmem>>, %arg6: memref<32x32xbf16, #tpu.memory_space<vmem>>, %arg7: memref<1x32xf32, #tpu.memory_space<vmem>>, %arg8: memref<1x32xf32, #tpu.memory_space<vmem>>, %arg9: memref<1x32xf32, #tpu.memory_space<vmem>>, %arg10: memref<32x128xbf16, #tpu.memory_space<vmem>>, %arg11: memref<1x128xf32, #tpu.memory_space<vmem>>, %arg12: memref<8x128xf32, #tpu.memory_space<vmem>>) attributes {dimension_semantics = [#tpu.dimension_semantics<parallel>], iteration_bounds = array<i64: 1>, scalar_prefetch = 0 : i64, scratch_operands = 0 : i64, tpu.core_type = #tpu.core_type<tc>, window_params = [{transform_indices = @transform_0, window_bounds = array<i64: 8, 32>}, {pipeline_mode = #tpu.pipeline_mode<synchronous>, transform_indices = @transform_1, window_bounds = array<i64: 32, 32>}, {pipeline_mode = #tpu.pipeline_mode<synchronous>, transform_indices = @transform_2, window_bounds = array<i64: 1, 32>}, {pipeline_mode = #tpu.pipeline_mode<synchronous>, transform_indices = @transform_3, window_bounds = array<i64: 1, 32>}, {pipeline_mode = #tpu.pipeline_mode<synchronous>, transform_indices = @transform_4, window_bounds = array<i64: 1, 32>}, {pipeline_mode = #tpu.pipeline_mode<synchronous>, transform_indices = @transform_5, window_bounds = array<i64: 32, 32>}, {pipeline_mode = #tpu.pipeline_mode<synchronous>, transform_indices = @transform_6, window_bounds = array<i64: 1, 32>}, {pipeline_mode = #tpu.pipeline_mode<synchronous>, transform_indices = @transform_7, window_bounds = array<i64: 1, 32>}, {pipeline_mode = #tpu.pipeline_mode<synchronous>, transform_indices = @transform_8, window_bounds = array<i64: 1, 32>}, {pipeline_mode = #tpu.pipeline_mode<synchronous>, transform_indices = @transform_9, window_bounds = array<i64: 32, 128>}, {pipeline_mode = #tpu.pipeline_mode<synchronous>, transform_indices = @transform_10, window_bounds = array<i64: 1, 128>}, {transform_indices = @transform_11, window_bounds = array<i64: 8, 128>}]} {
    %c0 = arith.constant 0 : index
    %c0_0 = arith.constant 0 : index
    %0 = vector.load %arg1[%c0, %c0_0] : memref<8x32xf32, #tpu.memory_space<vmem>>, vector<8x32xf32>
    %1 = arith.truncf %0 : vector<8x32xf32> to vector<8x32xbf16>
    %c0_1 = arith.constant 0 : index
    %c0_2 = arith.constant 0 : index
    %2 = vector.load %arg2[%c0_1, %c0_2] : memref<32x32xbf16, #tpu.memory_space<vmem>>, vector<32x32xbf16>
    %cst = arith.constant dense<0.000000e+00> : vector<8x32xf32>
    %3 = tpu.matmul %1, %2, %cst {dimension_numbers = #tpu.dot_dimension_numbers<[1], [0], [0], [1], [0, 0, 1, 1], [], []>} : vector<8x32xbf16>, vector<32x32xbf16>, vector<8x32xf32> -> vector<8x32xf32>
    %c0_3 = arith.constant 0 : index
    %c0_4 = arith.constant 0 : index
    %4 = vector.load %arg3[%c0_3, %c0_4] : memref<1x32xf32, #tpu.memory_space<vmem>>, vector<1x32xf32>
    %5 = vector.broadcast %4 : vector<1x32xf32> to vector<8x32xf32>
    %6 = arith.addf %3, %5 : vector<8x32xf32>
    %cst_5 = arith.constant 0.000000e+00 : f32
    %7 = vector.broadcast %cst_5 : f32 to vector<8x32xf32>
    %8 = arith.maximumf %6, %7 : vector<8x32xf32>
    %c0_6 = arith.constant 0 : index
    %c0_7 = arith.constant 0 : index
    %9 = vector.load %arg4[%c0_6, %c0_7] : memref<1x32xf32, #tpu.memory_space<vmem>>, vector<1x32xf32>
    %c0_8 = arith.constant 0 : index
    %c0_9 = arith.constant 0 : index
    %10 = vector.load %arg5[%c0_8, %c0_9] : memref<1x32xf32, #tpu.memory_space<vmem>>, vector<1x32xf32>
    %cst_10 = arith.constant dense<0.000000e+00> : vector<8xf32>
    %11 = vector.multi_reduction <add>, %8, %cst_10 [1] : vector<8x32xf32> to vector<8xf32>
    %12 = vector.shape_cast %11 : vector<8xf32> to vector<8x1xf32>
    %cst_11 = arith.constant 3.200000e+01 : f32
    %13 = vector.broadcast %cst_11 : f32 to vector<8x1xf32>
    %14 = arith.divf %12, %13 : vector<8x1xf32>
    %15 = vector.broadcast %14 : vector<8x1xf32> to vector<8x32xf32>
    %16 = arith.subf %8, %15 : vector<8x32xf32>
    %17 = arith.mulf %16, %16 : vector<8x32xf32>
    %cst_12 = arith.constant dense<0.000000e+00> : vector<8xf32>
    %18 = vector.multi_reduction <add>, %17, %cst_12 [1] : vector<8x32xf32> to vector<8xf32>
    %19 = vector.shape_cast %18 : vector<8xf32> to vector<8x1xf32>
    %cst_13 = arith.constant 3.200000e+01 : f32
    %20 = vector.broadcast %cst_13 : f32 to vector<8x1xf32>
    %21 = arith.divf %19, %20 : vector<8x1xf32>
    %cst_14 = arith.constant 9.99999974E-6 : f32
    %22 = vector.broadcast %cst_14 : f32 to vector<8x1xf32>
    %23 = arith.addf %21, %22 : vector<8x1xf32>
    %24 = math.rsqrt %23 : vector<8x1xf32>
    %25 = vector.broadcast %24 : vector<8x1xf32> to vector<8x32xf32>
    %26 = arith.mulf %16, %25 : vector<8x32xf32>
    %27 = vector.broadcast %9 : vector<1x32xf32> to vector<8x32xf32>
    %28 = arith.mulf %26, %27 : vector<8x32xf32>
    %29 = vector.broadcast %10 : vector<1x32xf32> to vector<8x32xf32>
    %30 = arith.addf %28, %29 : vector<8x32xf32>
    %31 = arith.truncf %30 : vector<8x32xf32> to vector<8x32xbf16>
    %c0_15 = arith.constant 0 : index
    %c0_16 = arith.constant 0 : index
    %32 = vector.load %arg6[%c0_15, %c0_16] : memref<32x32xbf16, #tpu.memory_space<vmem>>, vector<32x32xbf16>
    %cst_17 = arith.constant dense<0.000000e+00> : vector<8x32xf32>
    %33 = tpu.matmul %31, %32, %cst_17 {dimension_numbers = #tpu.dot_dimension_numbers<[1], [0], [0], [1], [0, 0, 1, 1], [], []>} : vector<8x32xbf16>, vector<32x32xbf16>, vector<8x32xf32> -> vector<8x32xf32>
    %c0_18 = arith.constant 0 : index
    %c0_19 = arith.constant 0 : index
    %34 = vector.load %arg7[%c0_18, %c0_19] : memref<1x32xf32, #tpu.memory_space<vmem>>, vector<1x32xf32>
    %35 = vector.broadcast %34 : vector<1x32xf32> to vector<8x32xf32>
    %36 = arith.addf %33, %35 : vector<8x32xf32>
    %cst_20 = arith.constant 0.000000e+00 : f32
    %37 = vector.broadcast %cst_20 : f32 to vector<8x32xf32>
    %38 = arith.maximumf %36, %37 : vector<8x32xf32>
    %c0_21 = arith.constant 0 : index
    %c0_22 = arith.constant 0 : index
    %39 = vector.load %arg8[%c0_21, %c0_22] : memref<1x32xf32, #tpu.memory_space<vmem>>, vector<1x32xf32>
    %c0_23 = arith.constant 0 : index
    %c0_24 = arith.constant 0 : index
    %40 = vector.load %arg9[%c0_23, %c0_24] : memref<1x32xf32, #tpu.memory_space<vmem>>, vector<1x32xf32>
    %cst_25 = arith.constant dense<0.000000e+00> : vector<8xf32>
    %41 = vector.multi_reduction <add>, %38, %cst_25 [1] : vector<8x32xf32> to vector<8xf32>
    %42 = vector.shape_cast %41 : vector<8xf32> to vector<8x1xf32>
    %cst_26 = arith.constant 3.200000e+01 : f32
    %43 = vector.broadcast %cst_26 : f32 to vector<8x1xf32>
    %44 = arith.divf %42, %43 : vector<8x1xf32>
    %45 = vector.broadcast %44 : vector<8x1xf32> to vector<8x32xf32>
    %46 = arith.subf %38, %45 : vector<8x32xf32>
    %47 = arith.mulf %46, %46 : vector<8x32xf32>
    %cst_27 = arith.constant dense<0.000000e+00> : vector<8xf32>
    %48 = vector.multi_reduction <add>, %47, %cst_27 [1] : vector<8x32xf32> to vector<8xf32>
    %49 = vector.shape_cast %48 : vector<8xf32> to vector<8x1xf32>
    %cst_28 = arith.constant 3.200000e+01 : f32
    %50 = vector.broadcast %cst_28 : f32 to vector<8x1xf32>
    %51 = arith.divf %49, %50 : vector<8x1xf32>
    %cst_29 = arith.constant 9.99999974E-6 : f32
    %52 = vector.broadcast %cst_29 : f32 to vector<8x1xf32>
    %53 = arith.addf %51, %52 : vector<8x1xf32>
    %54 = math.rsqrt %53 : vector<8x1xf32>
    %55 = vector.broadcast %54 : vector<8x1xf32> to vector<8x32xf32>
    %56 = arith.mulf %46, %55 : vector<8x32xf32>
    %57 = vector.broadcast %39 : vector<1x32xf32> to vector<8x32xf32>
    %58 = arith.mulf %56, %57 : vector<8x32xf32>
    %59 = vector.broadcast %40 : vector<1x32xf32> to vector<8x32xf32>
    %60 = arith.addf %58, %59 : vector<8x32xf32>
    %61 = arith.truncf %60 : vector<8x32xf32> to vector<8x32xbf16>
    %c0_30 = arith.constant 0 : index
    %c0_31 = arith.constant 0 : index
    %62 = vector.load %arg10[%c0_30, %c0_31] : memref<32x128xbf16, #tpu.memory_space<vmem>>, vector<32x128xbf16>
    %cst_32 = arith.constant dense<0.000000e+00> : vector<8x128xf32>
    %63 = tpu.matmul %61, %62, %cst_32 {dimension_numbers = #tpu.dot_dimension_numbers<[1], [0], [0], [1], [0, 0, 1, 1], [], []>} : vector<8x32xbf16>, vector<32x128xbf16>, vector<8x128xf32> -> vector<8x128xf32>
    %c0_33 = arith.constant 0 : index
    %c0_34 = arith.constant 0 : index
    %64 = vector.load %arg11[%c0_33, %c0_34] : memref<1x128xf32, #tpu.memory_space<vmem>>, vector<1x128xf32>
    %65 = vector.broadcast %64 : vector<1x128xf32> to vector<8x128xf32>
    %66 = arith.addf %63, %65 : vector<8x128xf32>
    %c0_35 = arith.constant 0 : index
    %c0_36 = arith.constant 0 : index
    %67 = vector.load %arg12[%c0_35, %c0_36] : memref<8x128xf32, #tpu.memory_space<vmem>>, vector<8x128xf32>
    tpu.vector_store %arg12[%c0_35, %c0_36], %66 {strides = array<i32>} : memref<8x128xf32, #tpu.memory_space<vmem>>, vector<8x128xf32>,
    return
  }
  func.func @transform_0(%arg0: i32) -> (i32, i32) {
    %c0_i32 = arith.constant 0 : i32
    %c0_i32_0 = arith.constant 0 : i32
    return %arg0, %c0_i32 : i32, i32
  }
  func.func @transform_1(%arg0: i32) -> (i32, i32) {
    %c0_i32 = arith.constant 0 : i32
    %c0_i32_0 = arith.constant 0 : i32
    %c0_i32_1 = arith.constant 0 : i32
    return %c0_i32, %c0_i32_0 : i32, i32
  }
  func.func @transform_2(%arg0: i32) -> (i32, i32) {
    %c0_i32 = arith.constant 0 : i32
    %c0_i32_0 = arith.constant 0 : i32
    %c0_i32_1 = arith.constant 0 : i32
    return %c0_i32, %c0_i32_0 : i32, i32
  }
  func.func @transform_3(%arg0: i32) -> (i32, i32) {
    %c0_i32 = arith.constant 0 : i32
    %c0_i32_0 = arith.constant 0 : i32
    %c0_i32_1 = arith.constant 0 : i32
    return %c0_i32, %c0_i32_0 : i32, i32
  }
  func.func @transform_4(%arg0: i32) -> (i32, i32) {
    %c0_i32 = arith.constant 0 : i32
    %c0_i32_0 = arith.constant 0 : i32
    %c0_i32_1 = arith.constant 0 : i32
    return %c0_i32, %c0_i32_0 : i32, i32
  }
  func.func @transform_5(%arg0: i32) -> (i32, i32) {
    %c0_i32 = arith.constant 0 : i32
    %c0_i32_0 = arith.constant 0 : i32
    %c0_i32_1 = arith.constant 0 : i32
    return %c0_i32, %c0_i32_0 : i32, i32
  }
  func.func @transform_6(%arg0: i32) -> (i32, i32) {
    %c0_i32 = arith.constant 0 : i32
    %c0_i32_0 = arith.constant 0 : i32
    %c0_i32_1 = arith.constant 0 : i32
    return %c0_i32, %c0_i32_0 : i32, i32
  }
  func.func @transform_7(%arg0: i32) -> (i32, i32) {
    %c0_i32 = arith.constant 0 : i32
    %c0_i32_0 = arith.constant 0 : i32
    %c0_i32_1 = arith.constant 0 : i32
    return %c0_i32, %c0_i32_0 : i32, i32
  }
  func.func @transform_8(%arg0: i32) -> (i32, i32) {
    %c0_i32 = arith.constant 0 : i32
    %c0_i32_0 = arith.constant 0 : i32
    %c0_i32_1 = arith.constant 0 : i32
    return %c0_i32, %c0_i32_0 : i32, i32
  }
  func.func @transform_9(%arg0: i32) -> (i32, i32) {
    %c0_i32 = arith.constant 0 : i32
    %c0_i32_0 = arith.constant 0 : i32
    %c0_i32_1 = arith.constant 0 : i32
    return %c0_i32, %c0_i32_0 : i32, i32
  }
  func.func @transform_10(%arg0: i32) -> (i32, i32) {
    %c0_i32 = arith.constant 0 : i32
    %c0_i32_0 = arith.constant 0 : i32
    %c0_i32_1 = arith.constant 0 : i32
    return %c0_i32, %c0_i32_0 : i32, i32
  }
  func.func @transform_11(%arg0: i32) -> (i32, i32) {
    %c0_i32 = arith.constant 0 : i32
    %c0_i32_0 = arith.constant 0 : i32
    return %arg0, %c0_i32 : i32, i32
  }
}

</mosaic_0001>

<llo_original>
// kernel: tpu_custom_call.1
$region0: #{tpu_custom_call.1}
  #allocation0 [shape = 'u32[]', space=smem, size = 0x4, offset = 0x4, fixed_abs, tag = 'smem constant byte address 0x4 - core index']
  #allocation1 [shape = 'u32[144,128]{1,0:T(1,128)}', space=vmem, size = 0x12000, scoped, tag = 'internal scratch']
  %s0 = inlined_call_operand.hbm [shape: f32[8,32], index: 0, kind: input, shape index: {}]
  %s1 = inlined_call_operand.hbm [shape: bf16[32,32], index: 1, kind: input, shape index: {}]
  %s2 = inlined_call_operand.vmem [shape: f32[1,32], index: 2, kind: input, shape index: {}]
  %s3 = inlined_call_operand.vmem [shape: f32[1,32], index: 3, kind: input, shape index: {}]
  %s4 = inlined_call_operand.hbm [shape: f32[1,32], index: 4, kind: input, shape index: {}]
  %s5 = inlined_call_operand.vmem [shape: bf16[32,32], index: 5, kind: input, shape index: {}]
  %s6 = inlined_call_operand.hbm [shape: f32[1,32], index: 6, kind: input, shape index: {}]
  %s7 = inlined_call_operand.hbm [shape: f32[1,32], index: 7, kind: input, shape index: {}]
  %s8 = inlined_call_operand.hbm [shape: f32[1,32], index: 8, kind: input, shape index: {}]
  %s9 = inlined_call_operand.vmem [shape: bf16[32,128], index: 9, kind: input, shape index: {}]
  %s10 = inlined_call_operand.vmem [shape: f32[1,128], index: 10, kind: input, shape index: {}]
  %s11 = inlined_call_operand.hbm [shape: f32[8,128], index: 11, kind: output, shape index: {}]
  %s12 = sld [smem:[#allocation0]]
  $region78: #{tpu_custom_call.1} parent=0
    _
  %s14 = ssub.s32 1, %s12
  %s15 = scalar_select 0, %s14, %s12
  $region1: #{tpu_custom_call.1} parent=0
    #allocation2 [shape = 'u8[4096]{0}', space=vmem, size = 0x1000, scoped, tag = 'input window, operand 0, single buffered']
    #allocation3 [shape = 's32[1]{0}', space=sflag, size = 0x4, scoped, tag = 'scoped memory for tpu_custom_call.1']
    #allocation4 [shape = 's32[1]{0}', space=sflag, size = 0x4, scoped, tag = 'scoped memory for tpu_custom_call.1']
    #allocation5 [shape = 'u8[8192]{0}', space=vmem, size = 0x2000, scoped, tag = 'input window, operand 1, single buffered']
    #allocation6 [shape = 's32[1]{0}', space=sflag, size = 0x4, scoped, tag = 'scoped memory for tpu_custom_call.1']
    #allocation7 [shape = 'u8[512]{0}', space=vmem, size = 0x400, scoped, tag = 'input window, operand 4, single buffered']
    #allocation8 [shape = 'u8[512]{0}', space=vmem, size = 0x400, scoped, tag = 'input window, operand 6, single buffered']
    #allocation9 [shape = 's32[1]{0}', space=sflag, size = 0x4, scoped, tag = 'scoped memory for tpu_custom_call.1']
    #allocation10 [shape = 'u8[512]{0}', space=vmem, size = 0x400, scoped, tag = 'input window, operand 7, single buffered']
    #allocation11 [shape = 'u8[512]{0}', space=vmem, size = 0x400, scoped, tag = 'input window, operand 8, single buffered']
    #allocation12 [shape = 's32[1]{0}', space=sflag, size = 0x4, scoped, tag = 'scoped memory for tpu_custom_call.1']
    #allocation13 [shape = 'u8[4096]{0}', space=vmem, size = 0x1000, scoped, tag = 'output window, operand 0, single buffered']
    %16 = vsyncpa [#allocation3], 0
    %17 = vsyncpa [#allocation6], 0
    %18 = vsyncpa [#allocation9], 0
    %19 = vsyncpa [#allocation12], 0
    %20 = vsyncpa [#allocation4], 0
    // Predicated region
    $region2: #{tpu_custom_call.1} parent=1 // pred_check
      _
    $region3: #{tpu_custom_call.1} parent=1 // pred_check_branch
      %22 = sbr.rel (0) target = $region5
    $region4: #{tpu_custom_call.1} parent=1 // pred_region
      %s24 = ssub.s32 128, 128
      %25 = vsyncadd [#allocation3], %s24
      %s27 = sshll.u32 [#allocation2], 4
      %s28 = int_to_ptr.vmem [resolvable:$true] %s27
      %30 = dma.hbm_to_vmem [thread:$0]  %s0, 128, %s28, [#allocation3]
    $region5: #{tpu_custom_call.1} parent=1 // pred_fallthru
      _
    // Predicated region
    $region6: #{tpu_custom_call.1} parent=1 // pred_check
      _
    $region7: #{tpu_custom_call.1} parent=1 // pred_check_branch
      %32 = sbr.rel (0) target = $region9
    $region8: #{tpu_custom_call.1} parent=1 // pred_region
      %s34 = ssub.s32 256, 256
      %35 = vsyncadd [#allocation6], %s34
      %s36 = sshll.u32 [#allocation5], 4
      %s37 = int_to_ptr.vmem [resolvable:$true] %s36
      %42 = dma.hbm_to_vmem [thread:$0]  %s1, 256, %s37, [#allocation6], 64, 64, 4
    $region9: #{tpu_custom_call.1} parent=1 // pred_fallthru
      _
    // Predicated region
    $region10: #{tpu_custom_call.1} parent=1 // pred_check
      _
    $region11: #{tpu_custom_call.1} parent=1 // pred_check_branch
      %44 = sbr.rel (0) target = $region13
    $region12: #{tpu_custom_call.1} parent=1 // pred_region
      _
    $region13: #{tpu_custom_call.1} parent=1 // pred_fallthru
      _
    // Predicated region
    $region14: #{tpu_custom_call.1} parent=1 // pred_check
      _
    $region15: #{tpu_custom_call.1} parent=1 // pred_check_branch
      %46 = sbr.rel (0) target = $region17
    $region16: #{tpu_custom_call.1} parent=1 // pred_region
      _
    $region17: #{tpu_custom_call.1} parent=1 // pred_fallthru
      _
    // Predicated region
    $region18: #{tpu_custom_call.1} parent=1 // pred_check
      _
    $region19: #{tpu_custom_call.1} parent=1 // pred_check_branch
      %48 = sbr.rel (0) target = $region21
    $region20: #{tpu_custom_call.1} parent=1 // pred_region
      %s50 = ssub.s32 16, 16
      %51 = vsyncadd [#allocation6], %s50
      %s53 = sshll.u32 [#allocation7], 4
      %s54 = int_to_ptr.vmem [resolvable:$true] %s53
      %56 = dma.hbm_to_vmem [thread:$0]  %s4, 16, %s54, [#allocation6]
    $region21: #{tpu_custom_call.1} parent=1 // pred_fallthru
      _
    // Predicated region
    $region22: #{tpu_custom_call.1} parent=1 // pred_check
      _
    $region23: #{tpu_custom_call.1} parent=1 // pred_check_branch
      %58 = sbr.rel (0) target = $region25
    $region24: #{tpu_custom_call.1} parent=1 // pred_region
      _
    $region25: #{tpu_custom_call.1} parent=1 // pred_fallthru
      _
    // Predicated region
    $region26: #{tpu_custom_call.1} parent=1 // pred_check
      _
    $region27: #{tpu_custom_call.1} parent=1 // pred_check_branch
      %60 = sbr.rel (0) target = $region29
    $region28: #{tpu_custom_call.1} parent=1 // pred_region
      %s62 = ssub.s32 16, 16
      %63 = vsyncadd [#allocation9], %s62
      %s65 = sshll.u32 [#allocation8], 4
      %s66 = int_to_ptr.vmem [resolvable:$true] %s65
      %68 = dma.hbm_to_vmem [thread:$0]  %s6, 16, %s66, [#allocation9]
    $region29: #{tpu_custom_call.1} parent=1 // pred_fallthru
      _
    // Predicated region
    $region30: #{tpu_custom_call.1} parent=1 // pred_check
      _
    $region31: #{tpu_custom_call.1} parent=1 // pred_check_branch
      %70 = sbr.rel (0) target = $region33
    $region32: #{tpu_custom_call.1} parent=1 // pred_region
      %s72 = ssub.s32 16, 16
      %73 = vsyncadd [#allocation9], %s72
      %s75 = sshll.u32 [#allocation10], 4
      %s76 = int_to_ptr.vmem [resolvable:$true] %s75
      %78 = dma.hbm_to_vmem [thread:$0]  %s7, 16, %s76, [#allocation9]
    $region33: #{tpu_custom_call.1} parent=1 // pred_fallthru
      _
    // Predicated region
    $region34: #{tpu_custom_call.1} parent=1 // pred_check
      _
    $region35: #{tpu_custom_call.1} parent=1 // pred_check_branch
      %80 = sbr.rel (0) target = $region37
    $region36: #{tpu_custom_call.1} parent=1 // pred_region
      %s82 = ssub.s32 16, 16
      %83 = vsyncadd [#allocation12], %s82
      %s85 = sshll.u32 [#allocation11], 4
      %s86 = int_to_ptr.vmem [resolvable:$true] %s85
      %88 = dma.hbm_to_vmem [thread:$0]  %s8, 16, %s86, [#allocation12]
    $region37: #{tpu_custom_call.1} parent=1 // pred_fallthru
      _
    // Predicated region
    $region38: #{tpu_custom_call.1} parent=1 // pred_check
      _
    $region39: #{tpu_custom_call.1} parent=1 // pred_check_branch
      %90 = sbr.rel (0) target = $region41
    $region40: #{tpu_custom_call.1} parent=1 // pred_region
      _
    $region41: #{tpu_custom_call.1} parent=1 // pred_fallthru
      _
    // Predicated region
    $region42: #{tpu_custom_call.1} parent=1 // pred_check
      _
    $region43: #{tpu_custom_call.1} parent=1 // pred_check_branch
      %92 = sbr.rel (0) target = $region45
    $region44: #{tpu_custom_call.1} parent=1 // pred_region
      _
    $region45: #{tpu_custom_call.1} parent=1 // pred_fallthru
      _
    // Predicated region
    $region46: #{tpu_custom_call.1} parent=1 // pred_check
      _
    $region47: #{tpu_custom_call.1} parent=1 // pred_check_branch
      %94 = sbr.rel (0) target = $region49
    $region48: #{tpu_custom_call.1} parent=1 // pred_region
      %95 = dma.done [#allocation3], 128
    $region49: #{tpu_custom_call.1} parent=1 // pred_fallthru
      _
    // Predicated region
    $region50: #{tpu_custom_call.1} parent=1 // pred_check
      _
    $region51: #{tpu_custom_call.1} parent=1 // pred_check_branch
      %97 = sbr.rel (0) target = $region53
    $region52: #{tpu_custom_call.1} parent=1 // pred_region
      %98 = dma.done [#allocation6], 256
    $region53: #{tpu_custom_call.1} parent=1 // pred_fallthru
      _
    // Predicated region
    $region54: #{tpu_custom_call.1} parent=1 // pred_check
      _
    $region55: #{tpu_custom_call.1} parent=1 // pred_check_branch
      %100 = sbr.rel (0) target = $region57
    $region56: #{tpu_custom_call.1} parent=1 // pred_region
      %101 = dma.done [#allocation6], 16
    $region57: #{tpu_custom_call.1} parent=1 // pred_fallthru
      _
    // Predicated region
    $region58: #{tpu_custom_call.1} parent=1 // pred_check
      _
    $region59: #{tpu_custom_call.1} parent=1 // pred_check_branch
      %103 = sbr.rel (0) target = $region61
    $region60: #{tpu_custom_call.1} parent=1 // pred_region
      %104 = dma.done [#allocation9], 16
    $region61: #{tpu_custom_call.1} parent=1 // pred_fallthru
      _
    // Predicated region
    $region62: #{tpu_custom_call.1} parent=1 // pred_check
      _
    $region63: #{tpu_custom_call.1} parent=1 // pred_check_branch
      %106 = sbr.rel (0) target = $region65
    $region64: #{tpu_custom_call.1} parent=1 // pred_region
      %107 = dma.done [#allocation9], 16
    $region65: #{tpu_custom_call.1} parent=1 // pred_fallthru
      _
    // Predicated region
    $region66: #{tpu_custom_call.1} parent=1 // pred_check
      _
    $region67: #{tpu_custom_call.1} parent=1 // pred_check_branch
      %109 = sbr.rel (0) target = $region69
    $region68: #{tpu_custom_call.1} parent=1 // pred_region
      %110 = dma.done [#allocation12], 16
    $region69: #{tpu_custom_call.1} parent=1 // pred_fallthru
      _
    %v112 = vld [vmem:[#allocation2] sm:$0xff]
    %v113 = vpack.c.bf16 %v112, %v112
    %v114 = vld [vmem:[#allocation5] sm:$0xf]
    %v115 = vld [vmem:[#allocation5 + $0x4] sm:$0xf]
    %v116 = vld [vmem:[#allocation5 + $0x8] sm:$0xf]
    %v117 = vld [vmem:[#allocation5 + $0xc] sm:$0xf]
    %v118 = vld [vmem:[%s2] sm:$0x1]
    %v120 = vlaneseq
    %v121 = vshrl.u32 %v120, 7
    %v122 = vsub.s32 0, %v121
    %v123 = vrot.slane %v118, %v122
    %v129 = vunpack.c.l.b16 %v114
    %v130 = vunpack.c.l.b16 %v115
    %v131 = vunpack.c.l.b16 %v116
    %v132 = vunpack.c.l.b16 %v117
    %v133 = vpack.c.b16 %v130, %v129
    %v134 = vpack.c.b16 %v132, %v131
    %vm137 = vcmask 261120
    %v139 = vsel %vm137, %v113, 0
    %141 = vmatprep.subr.bf16.mxu0 0
    %142 = vmatpush1.bf16.msra.mxu0 %v133
    %143 = vmatprep.subr.bf16.mxu0 0
    %144 = vmatpush1.bf16.msra.mxu0 %v134
    %145 = vmatprep.subr.bf16.mxu0 0
    %146 = vmatpush1.bf16.msra.mxu0 0
    %147 = vmatprep.subr.bf16.mxu0 0
    %148 = vmatpush1.bf16.msra.mxu0 0
    %149 = vmatprep.subr.bf16.mxu0 0
    %150 = vmatpush1.bf16.msra.mxu0 0
    %151 = vmatprep.subr.bf16.mxu0 0
    %152 = vmatpush1.bf16.msra.mxu0 0
    %153 = vmatprep.subr.bf16.mxu0 0
    %154 = vmatpush1.bf16.msra.mxu0 0
    %155 = vmatprep.subr.bf16.mxu0 0
    %156 = vmatpush1.bf16.msra.mxu0 0
    %157 = vmatprep.subr.bf16.mxu0 0
    %158 = vmatpush1.bf16.msra.mxu0 0
    %159 = vmatprep.subr.bf16.mxu0 0
    %160 = vmatpush1.bf16.msra.mxu0 0
    %161 = vmatprep.subr.bf16.mxu0 0
    %162 = vmatpush1.bf16.msra.mxu0 0
    %163 = vmatprep.subr.bf16.mxu0 0
    %164 = vmatpush1.bf16.msra.mxu0 0
    %165 = vmatprep.subr.bf16.mxu0 0
    %166 = vmatpush1.bf16.msra.mxu0 0
    %167 = vmatprep.subr.bf16.mxu0 0
    %168 = vmatpush1.bf16.msra.mxu0 0
    %169 = vmatprep.subr.bf16.mxu0 0
    %170 = vmatpush1.bf16.msra.mxu0 0
    %171 = vmatprep.subr.bf16.mxu0 0
    %172 = vmatpush1.bf16.msra.mxu0 0
    %173 = vmatprep.mubr.bf16.mxu0 0
    %174 = vmatmul.mubr.bf16.gmra.mrb[0].mxu0 %v139
    %v175 = vpop.f32.mrb[0].mxu0
    %v176 = vadd.f32 %v123, %v175
    %v177 = vpop.f32.mrb[0].mxu0
    %v178 = vpop.f32.mrb[0].mxu0
    %v179 = vpop.f32.mrb[0].mxu0
    %180 = vdwg.mxu0
    %v181 = vmax.f32 %v176, 0.0
    %v182 = vld [vmem:[%s3] sm:$0x1]
    %v183 = vld [vmem:[#allocation7] sm:$0x1]
    %v184 = vsel %vm137, %v181, 0.0
    %185 = vadd.xlane.f32.xlu0 %v184
    %v186 = vpop.xlane.xlu0 %185
    %v187 = vrcp.pop 32.0
    %v188 = vmul.f32 %v186, %v187
    %v189 = vsub.f32 %v181, %v188
    %v190 = vmul.f32 %v189, %v189
    %v191 = vsel %vm137, %v190, 0.0
    %192 = vadd.xlane.f32.xlu0 %v191
    %v193 = vpop.xlane.xlu0 %192
    %v194 = vmul.f32 %v193, %v187
    %v195 = vadd.f32 %v194, 1e-05
    %v196 = vrsqrt.pop %v195
    %v197 = vmul.f32 %v189, %v196
    %v199 = vlaneseq
    %v200 = vshrl.u32 %v199, 7
    %v201 = vsub.s32 0, %v200
    %v202 = vrot.slane %v182, %v201
    %v204 = vmul.f32 %v197, %v202
    %v206 = vlaneseq
    %v207 = vshrl.u32 %v206, 7
    %v208 = vsub.s32 0, %v207
    %v209 = vrot.slane %v183, %v208
    %v211 = vadd.f32 %v204, %v209
    %v212 = vpack.c.bf16 %v211, %v211
    %v213 = vld [vmem:[%s5] sm:$0xf]
    %v214 = vld [vmem:[%s5 + $0x4] sm:$0xf]
    %v215 = vld [vmem:[%s5 + $0x8] sm:$0xf]
    %v216 = vld [vmem:[%s5 + $0xc] sm:$0xf]
    %v217 = vld [vmem:[#allocation8] sm:$0x1]
    %v219 = vlaneseq
    %v220 = vshrl.u32 %v219, 7
    %v221 = vsub.s32 0, %v220
    %v222 = vrot.slane %v217, %v221
    %v228 = vunpack.c.l.b16 %v213
    %v229 = vunpack.c.l.b16 %v214
    %v230 = vunpack.c.l.b16 %v215
    %v231 = vunpack.c.l.b16 %v216
    %v232 = vpack.c.b16 %v229, %v228
    %v233 = vpack.c.b16 %v231, %v230
    %v237 = vsel %vm137, %v212, 0
    %239 = vmatprep.subr.bf16.mxu0 0
    %240 = vmatpush1.bf16.msra.mxu0 %v232
    %241 = vmatprep.subr.bf16.mxu0 0
    %242 = vmatpush1.bf16.msra.mxu0 %v233
    %243 = vmatprep.subr.bf16.mxu0 0
    %244 = vmatpush1.bf16.msra.mxu0 0
    %245 = vmatprep.subr.bf16.mxu0 0
    %246 = vmatpush1.bf16.msra.mxu0 0
    %247 = vmatprep.subr.bf16.mxu0 0
    %248 = vmatpush1.bf16.msra.mxu0 0
    %249 = vmatprep.subr.bf16.mxu0 0
    %250 = vmatpush1.bf16.msra.mxu0 0
    %251 = vmatprep.subr.bf16.mxu0 0
    %252 = vmatpush1.bf16.msra.mxu0 0
    %253 = vmatprep.subr.bf16.mxu0 0
    %254 = vmatpush1.bf16.msra.mxu0 0
    %255 = vmatprep.subr.bf16.mxu0 0
    %256 = vmatpush1.bf16.msra.mxu0 0
    %257 = vmatprep.subr.bf16.mxu0 0
    %258 = vmatpush1.bf16.msra.mxu0 0
    %259 = vmatprep.subr.bf16.mxu0 0
    %260 = vmatpush1.bf16.msra.mxu0 0
    %261 = vmatprep.subr.bf16.mxu0 0
    %262 = vmatpush1.bf16.msra.mxu0 0
    %263 = vmatprep.subr.bf16.mxu0 0
    %264 = vmatpush1.bf16.msra.mxu0 0
    %265 = vmatprep.subr.bf16.mxu0 0
    %266 = vmatpush1.bf16.msra.mxu0 0
    %267 = vmatprep.subr.bf16.mxu0 0
    %268 = vmatpush1.bf16.msra.mxu0 0
    %269 = vmatprep.subr.bf16.mxu0 0
    %270 = vmatpush1.bf16.msra.mxu0 0
    %271 = vmatprep.mubr.bf16.mxu0 0
    %272 = vmatmul.mubr.bf16.gmra.mrb[0].mxu0 %v237
    %v273 = vpop.f32.mrb[0].mxu0
    %v274 = vadd.f32 %v222, %v273
    %v275 = vpop.f32.mrb[0].mxu0
    %v276 = vpop.f32.mrb[0].mxu0
    %v277 = vpop.f32.mrb[0].mxu0
    %278 = vdwg.mxu0
    %v279 = vmax.f32 %v274, 0.0
    %v280 = vld [vmem:[#allocation10] sm:$0x1]
    %v281 = vld [vmem:[#allocation11] sm:$0x1]
    %v282 = vsel %vm137, %v279, 0.0
    %283 = vadd.xlane.f32.xlu0 %v282
    %v284 = vpop.xlane.xlu0 %283
    %v285 = vmul.f32 %v284, %v187
    %v286 = vsub.f32 %v279, %v285
    %v287 = vmul.f32 %v286, %v286
    %v288 = vsel %vm137, %v287, 0.0
    %289 = vadd.xlane.f32.xlu0 %v288
    %v290 = vpop.xlane.xlu0 %289
    %v291 = vmul.f32 %v290, %v187
    %v292 = vadd.f32 %v291, 1e-05
    %v293 = vrsqrt.pop %v292
    %v294 = vmul.f32 %v286, %v293
    %v296 = vlaneseq
    %v297 = vshrl.u32 %v296, 7
    %v298 = vsub.s32 0, %v297
    %v299 = vrot.slane %v280, %v298
    %v301 = vmul.f32 %v294, %v299
    %v303 = vlaneseq
    %v304 = vshrl.u32 %v303, 7
    %v305 = vsub.s32 0, %v304
    %v306 = vrot.slane %v281, %v305
    %v308 = vadd.f32 %v301, %v306
    %v309 = vpack.c.bf16 %v308, %v308
    %v310 = vld [vmem:[%s9] sm:$0xf]
    %v311 = vld [vmem:[%s9 + $0x4] sm:$0xf]
    %v312 = vld [vmem:[%s9 + $0x8] sm:$0xf]
    %v313 = vld [vmem:[%s9 + $0xc] sm:$0xf]
    %v314 = vld [vmem:[%s10] sm:$0x1]
    %v316 = vlaneseq
    %v317 = vshrl.u32 %v316, 7
    %v318 = vsub.s32 0, %v317
    %v319 = vrot.slane %v314, %v318
    %v325 = vunpack.c.l.b16 %v310
    %v326 = vunpack.c.l.b16 %v311
    %v327 = vunpack.c.l.b16 %v312
    %v328 = vunpack.c.l.b16 %v313
    %v329 = vpack.c.b16 %v326, %v325
    %v330 = vpack.c.b16 %v328, %v327
    %v334 = vsel %vm137, %v309, 0
    %336 = vmatprep.subr.bf16.mxu0 0
    %337 = vmatpush1.bf16.msra.mxu0 %v329
    %338 = vmatprep.subr.bf16.mxu0 0
    %339 = vmatpush1.bf16.msra.mxu0 %v330
    %340 = vmatprep.subr.bf16.mxu0 0
    %341 = vmatpush1.bf16.msra.mxu0 0
    %342 = vmatprep.subr.bf16.mxu0 0
    %343 = vmatpush1.bf16.msra.mxu0 0
    %344 = vmatprep.subr.bf16.mxu0 0
    %345 = vmatpush1.bf16.msra.mxu0 0
    %346 = vmatprep.subr.bf16.mxu0 0
    %347 = vmatpush1.bf16.msra.mxu0 0
    %348 = vmatprep.subr.bf16.mxu0 0
    %349 = vmatpush1.bf16.msra.mxu0 0
    %350 = vmatprep.subr.bf16.mxu0 0
    %351 = vmatpush1.bf16.msra.mxu0 0
    %352 = vmatprep.subr.bf16.mxu0 0
    %353 = vmatpush1.bf16.msra.mxu0 0
    %354 = vmatprep.subr.bf16.mxu0 0
    %355 = vmatpush1.bf16.msra.mxu0 0
    %356 = vmatprep.subr.bf16.mxu0 0
    %357 = vmatpush1.bf16.msra.mxu0 0
    %358 = vmatprep.subr.bf16.mxu0 0
    %359 = vmatpush1.bf16.msra.mxu0 0
    %360 = vmatprep.subr.bf16.mxu0 0
    %361 = vmatpush1.bf16.msra.mxu0 0
    %362 = vmatprep.subr.bf16.mxu0 0
    %363 = vmatpush1.bf16.msra.mxu0 0
    %364 = vmatprep.subr.bf16.mxu0 0
    %365 = vmatpush1.bf16.msra.mxu0 0
    %366 = vmatprep.subr.bf16.mxu0 0
    %367 = vmatpush1.bf16.msra.mxu0 0
    %368 = vmatprep.mubr.bf16.mxu0 0
    %369 = vmatmul.mubr.bf16.gmra.mrb[0].mxu0 %v334
    %v370 = vpop.f32.mrb[0].mxu0
    %v371 = vadd.f32 %v319, %v370
    %v372 = vpop.f32.mrb[0].mxu0
    %v373 = vpop.f32.mrb[0].mxu0
    %v374 = vpop.f32.mrb[0].mxu0
    %375 = vdwg.mxu0
    %376 = vst [vmem:[#allocation13] sm:$0xff] %v371
    // Predicated region
    $region70: #{tpu_custom_call.1} parent=1 // pred_check
      _
    $region71: #{tpu_custom_call.1} parent=1 // pred_check_branch
      %378 = sbr.rel (0) target = $region73
    $region72: #{tpu_custom_call.1} parent=1 // pred_region
      %s380 = ssub.s32 128, 128
      %381 = vsyncadd [#allocation4], %s380
      %s383 = sshll.u32 [#allocation13], 4
      %s384 = int_to_ptr.vmem [resolvable:$true] %s383
      %386 = dma.vmem_to_hbm [thread:$0]  %s384, 128, %s11, [#allocation4]
    $region73: #{tpu_custom_call.1} parent=1 // pred_fallthru
      _
    // Predicated region
    $region74: #{tpu_custom_call.1} parent=1 // pred_check
      _
    $region75: #{tpu_custom_call.1} parent=1 // pred_check_branch
      %388 = sbr.rel (0) target = $region77
    $region76: #{tpu_custom_call.1} parent=1 // pred_region
      %389 = dma.done [#allocation4], 128
    $region77: #{tpu_custom_call.1} parent=1 // pred_fallthru
      _
    %390 = vsyncpa [#allocation3], 1
    %391 = vsyncpa [#allocation6], 1
    %392 = vsyncpa [#allocation9], 1
    %393 = vsyncpa [#allocation12], 1
    %394 = vsyncpa [#allocation4], 1

// kernel: tpu_custom_call.1
$region0: #{tpu_custom_call.1}
  #allocation0 [shape = 'u32[]', space=smem, size = 0x4, offset = 0x4, fixed_abs, tag = 'smem constant byte address 0x4 - core index']
  #allocation1 [shape = 'u32[144,128]{1,0:T(1,128)}', space=vmem, size = 0x12000, scoped, tag = 'internal scratch']
  %s0 = inlined_call_operand.hbm [shape: f32[8,32], index: 0, kind: input, shape index: {}]
  %s1 = inlined_call_operand.hbm [shape: bf16[32,32], index: 1, kind: input, shape index: {}]
  %s2 = inlined_call_operand.vmem [shape: f32[1,32], index: 2, kind: input, shape index: {}]
  %s3 = inlined_call_operand.vmem [shape: f32[1,32], index: 3, kind: input, shape index: {}]
  %s4 = inlined_call_operand.hbm [shape: f32[1,32], index: 4, kind: input, shape index: {}]
  %s5 = inlined_call_operand.vmem [shape: bf16[32,32], index: 5, kind: input, shape index: {}]
  %s6 = inlined_call_operand.hbm [shape: f32[1,32], index: 6, kind: input, shape index: {}]
  %s7 = inlined_call_operand.hbm [shape: f32[1,32], index: 7, kind: input, shape index: {}]
  %s8 = inlined_call_operand.hbm [shape: f32[1,32], index: 8, kind: input, shape index: {}]
  %s9 = inlined_call_operand.vmem [shape: bf16[32,128], index: 9, kind: input, shape index: {}]
  %s10 = inlined_call_operand.vmem [shape: f32[1,128], index: 10, kind: input, shape index: {}]
  %s11 = inlined_call_operand.hbm [shape: f32[8,128], index: 11, kind: output, shape index: {}]
  %s12 = sld [smem:[#allocation0]]
  $region78: #{tpu_custom_call.1} parent=0
    _
  %s14 = ssub.s32 1, %s12
  %s15 = scalar_select 0, %s14, %s12
  $region1: #{tpu_custom_call.1} parent=0
    #allocation2 [shape = 'u8[4096]{0}', space=vmem, size = 0x1000, scoped, tag = 'input window, operand 0, single buffered']
    #allocation3 [shape = 's32[1]{0}', space=sflag, size = 0x4, scoped, tag = 'scoped memory for tpu_custom_call.1']
    #allocation4 [shape = 's32[1]{0}', space=sflag, size = 0x4, scoped, tag = 'scoped memory for tpu_custom_call.1']
    #allocation5 [shape = 'u8[8192]{0}', space=vmem, size = 0x2000, scoped, tag = 'input window, operand 1, single buffered']
    #allocation6 [shape = 's32[1]{0}', space=sflag, size = 0x4, scoped, tag = 'scoped memory for tpu_custom_call.1']
    #allocation7 [shape = 'u8[512]{0}', space=vmem, size = 0x400, scoped, tag = 'input window, operand 4, single buffered']
    #allocation8 [shape = 'u8[512]{0}', space=vmem, size = 0x400, scoped, tag = 'input window, operand 6, single buffered']
    #allocation9 [shape = 's32[1]{0}', space=sflag, size = 0x4, scoped, tag = 'scoped memory for tpu_custom_call.1']
    #allocation10 [shape = 'u8[512]{0}', space=vmem, size = 0x400, scoped, tag = 'input window, operand 7, single buffered']
    #allocation11 [shape = 'u8[512]{0}', space=vmem, size = 0x400, scoped, tag = 'input window, operand 8, single buffered']
    #allocation12 [shape = 's32[1]{0}', space=sflag, size = 0x4, scoped, tag = 'scoped memory for tpu_custom_call.1']
    #allocation13 [shape = 'u8[4096]{0}', space=vmem, size = 0x1000, scoped, tag = 'output window, operand 0, single buffered']
    %16 = vsyncpa [#allocation3], 0
    %17 = vsyncpa [#allocation6], 0
    %18 = vsyncpa [#allocation9], 0
    %19 = vsyncpa [#allocation12], 0
    %20 = vsyncpa [#allocation4], 0
    // Predicated region
    $region2: #{tpu_custom_call.1} parent=1 // pred_check
      _
    $region3: #{tpu_custom_call.1} parent=1 // pred_check_branch
      %22 = sbr.rel (0) target = $region5
    $region4: #{tpu_custom_call.1} parent=1 // pred_region
      %s24 = ssub.s32 128, 128
      %25 = vsyncadd [#allocation3], %s24
      %s27 = sshll.u32 [#allocation2], 4
      %s28 = int_to_ptr.vmem [resolvable:$true] %s27
      %30 = dma.hbm_to_vmem [thread:$0]  %s0, 128, %s28, [#allocation3]
    $region5: #{tpu_custom_call.1} parent=1 // pred_fallthru
      _
    // Predicated region
    $region6: #{tpu_custom_call.1} parent=1 // pred_check
      _
    $region7: #{tpu_custom_call.1} parent=1 // pred_check_branch
      %32 = sbr.rel (0) target = $region9
    $region8: #{tpu_custom_call.1} parent=1 // pred_region
      %s34 = ssub.s32 256, 256
      %35 = vsyncadd [#allocation6], %s34
      %s36 = sshll.u32 [#allocation5], 4
      %s37 = int_to_ptr.vmem [resolvable:$true] %s36
      %42 = dma.hbm_to_vmem [thread:$0]  %s1, 256, %s37, [#allocation6], 64, 64, 4
    $region9: #{tpu_custom_call.1} parent=1 // pred_fallthru
      _
    // Predicated region
    $region10: #{tpu_custom_call.1} parent=1 // pred_check
      _
    $region11: #{tpu_custom_call.1} parent=1 // pred_check_branch
      %44 = sbr.rel (0) target = $region13
    $region12: #{tpu_custom_call.1} parent=1 // pred_region
      _
    $region13: #{tpu_custom_call.1} parent=1 // pred_fallthru
      _
    // Predicated region
    $region14: #{tpu_custom_call.1} parent=1 // pred_check
      _
    $region15: #{tpu_custom_call.1} parent=1 // pred_check_branch
      %46 = sbr.rel (0) target = $region17
    $region16: #{tpu_custom_call.1} parent=1 // pred_region
      _
    $region17: #{tpu_custom_call.1} parent=1 // pred_fallthru
      _
    // Predicated region
    $region18: #{tpu_custom_call.1} parent=1 // pred_check
      _
    $region19: #{tpu_custom_call.1} parent=1 // pred_check_branch
      %48 = sbr.rel (0) target = $region21
    $region20: #{tpu_custom_call.1} parent=1 // pred_region
      %s50 = ssub.s32 16, 16
      %51 = vsyncadd [#allocation6], %s50
      %s53 = sshll.u32 [#allocation7], 4
      %s54 = int_to_ptr.vmem [resolvable:$true] %s53
      %56 = dma.hbm_to_vmem [thread:$0]  %s4, 16, %s54, [#allocation6]
    $region21: #{tpu_custom_call.1} parent=1 // pred_fallthru
      _
    // Predicated region
    $region22: #{tpu_custom_call.1} parent=1 // pred_check
      _
    $region23: #{tpu_custom_call.1} parent=1 // pred_check_branch
      %58 = sbr.rel (0) target = $region25
    $region24: #{tpu_custom_call.1} parent=1 // pred_region
      _
    $region25: #{tpu_custom_call.1} parent=1 // pred_fallthru
      _
    // Predicated region
    $region26: #{tpu_custom_call.1} parent=1 // pred_check
      _
    $region27: #{tpu_custom_call.1} parent=1 // pred_check_branch
      %60 = sbr.rel (0) target = $region29
    $region28: #{tpu_custom_call.1} parent=1 // pred_region
      %s62 = ssub.s32 16, 16
      %63 = vsyncadd [#allocation9], %s62
      %s65 = sshll.u32 [#allocation8], 4
      %s66 = int_to_ptr.vmem [resolvable:$true] %s65
      %68 = dma.hbm_to_vmem [thread:$0]  %s6, 16, %s66, [#allocation9]
    $region29: #{tpu_custom_call.1} parent=1 // pred_fallthru
      _
    // Predicated region
    $region30: #{tpu_custom_call.1} parent=1 // pred_check
      _
    $region31: #{tpu_custom_call.1} parent=1 // pred_check_branch
      %70 = sbr.rel (0) target = $region33
    $region32: #{tpu_custom_call.1} parent=1 // pred_region
      %s72 = ssub.s32 16, 16
      %73 = vsyncadd [#allocation9], %s72
      %s75 = sshll.u32 [#allocation10], 4
      %s76 = int_to_ptr.vmem [resolvable:$true] %s75
      %78 = dma.hbm_to_vmem [thread:$0]  %s7, 16, %s76, [#allocation9]
    $region33: #{tpu_custom_call.1} parent=1 // pred_fallthru
      _
    // Predicated region
    $region34: #{tpu_custom_call.1} parent=1 // pred_check
      _
    $region35: #{tpu_custom_call.1} parent=1 // pred_check_branch
      %80 = sbr.rel (0) target = $region37
    $region36: #{tpu_custom_call.1} parent=1 // pred_region
      %s82 = ssub.s32 16, 16
      %83 = vsyncadd [#allocation12], %s82
      %s85 = sshll.u32 [#allocation11], 4
      %s86 = int_to_ptr.vmem [resolvable:$true] %s85
      %88 = dma.hbm_to_vmem [thread:$0]  %s8, 16, %s86, [#allocation12]
    $region37: #{tpu_custom_call.1} parent=1 // pred_fallthru
      _
    // Predicated region
    $region38: #{tpu_custom_call.1} parent=1 // pred_check
      _
    $region39: #{tpu_custom_call.1} parent=1 // pred_check_branch
      %90 = sbr.rel (0) target = $region41
    $region40: #{tpu_custom_call.1} parent=1 // pred_region
      _
    $region41: #{tpu_custom_call.1} parent=1 // pred_fallthru
      _
    // Predicated region
    $region42: #{tpu_custom_call.1} parent=1 // pred_check
      _
    $region43: #{tpu_custom_call.1} parent=1 // pred_check_branch
      %92 = sbr.rel (0) target = $region45
    $region44: #{tpu_custom_call.1} parent=1 // pred_region
      _
    $region45: #{tpu_custom_call.1} parent=1 // pred_fallthru
      _
    // Predicated region
    $region46: #{tpu_custom_call.1} parent=1 // pred_check
      _
    $region47: #{tpu_custom_call.1} parent=1 // pred_check_branch
      %94 = sbr.rel (0) target = $region49
    $region48: #{tpu_custom_call.1} parent=1 // pred_region
      %95 = dma.done [#allocation3], 128
    $region49: #{tpu_custom_call.1} parent=1 // pred_fallthru
      _
    // Predicated region
    $region50: #{tpu_custom_call.1} parent=1 // pred_check
      _
    $region51: #{tpu_custom_call.1} parent=1 // pred_check_branch
      %97 = sbr.rel (0) target = $region53
    $region52: #{tpu_custom_call.1} parent=1 // pred_region
      %98 = dma.done [#allocation6], 256
    $region53: #{tpu_custom_call.1} parent=1 // pred_fallthru
      _
    // Predicated region
    $region54: #{tpu_custom_call.1} parent=1 // pred_check
      _
    $region55: #{tpu_custom_call.1} parent=1 // pred_check_branch
      %100 = sbr.rel (0) target = $region57
    $region56: #{tpu_custom_call.1} parent=1 // pred_region
      %101 = dma.done [#allocation6], 16
    $region57: #{tpu_custom_call.1} parent=1 // pred_fallthru
      _
    // Predicated region
    $region58: #{tpu_custom_call.1} parent=1 // pred_check
      _
    $region59: #{tpu_custom_call.1} parent=1 // pred_check_branch
      %103 = sbr.rel (0) target = $region61
    $region60: #{tpu_custom_call.1} parent=1 // pred_region
      %104 = dma.done [#allocation9], 16
    $region61: #{tpu_custom_call.1} parent=1 // pred_fallthru
      _
    // Predicated region
    $region62: #{tpu_custom_call.1} parent=1 // pred_check
      _
    $region63: #{tpu_custom_call.1} parent=1 // pred_check_branch
      %106 = sbr.rel (0) target = $region65
    $region64: #{tpu_custom_call.1} parent=1 // pred_region
      %107 = dma.done [#allocation9], 16
    $region65: #{tpu_custom_call.1} parent=1 // pred_fallthru
      _
    // Predicated region
    $region66: #{tpu_custom_call.1} parent=1 // pred_check
      _
    $region67: #{tpu_custom_call.1} parent=1 // pred_check_branch
      %109 = sbr.rel (0) target = $region69
    $region68: #{tpu_custom_call.1} parent=1 // pred_region
      %110 = dma.done [#allocation12], 16
    $region69: #{tpu_custom_call.1} parent=1 // pred_fallthru
      _
    %v112 = vld [vmem:[#allocation2] sm:$0xff]
    %v113 = vpack.c.bf16 %v112, %v112
    %v114 = vld [vmem:[#allocation5] sm:$0xf]
    %v115 = vld [vmem:[#allocation5 + $0x4] sm:$0xf]
    %v116 = vld [vmem:[#allocation5 + $0x8] sm:$0xf]
    %v117 = vld [vmem:[#allocation5 + $0xc] sm:$0xf]
    %v118 = vld [vmem:[%s2] sm:$0x1]
    %v120 = vlaneseq
    %v121 = vshrl.u32 %v120, 7
    %v122 = vsub.s32 0, %v121
    %v123 = vrot.slane %v118, %v122
    %v129 = vunpack.c.l.b16 %v114
    %v130 = vunpack.c.l.b16 %v115
    %v131 = vunpack.c.l.b16 %v116
    %v132 = vunpack.c.l.b16 %v117
    %v133 = vpack.c.b16 %v130, %v129
    %v134 = vpack.c.b16 %v132, %v131
    %vm137 = vcmask 261120
    %v139 = vsel %vm137, %v113, 0
    %141 = vmatprep.subr.bf16.mxu0 0
    %142 = vmatpush1.bf16.msra.mxu0 %v133
    %143 = vmatprep.subr.bf16.mxu0 0
    %144 = vmatpush1.bf16.msra.mxu0 %v134
    %145 = vmatprep.subr.bf16.mxu0 0
    %146 = vmatpush1.bf16.msra.mxu0 0
    %147 = vmatprep.subr.bf16.mxu0 0
    %148 = vmatpush1.bf16.msra.mxu0 0
    %149 = vmatprep.subr.bf16.mxu0 0
    %150 = vmatpush1.bf16.msra.mxu0 0
    %151 = vmatprep.subr.bf16.mxu0 0
    %152 = vmatpush1.bf16.msra.mxu0 0
    %153 = vmatprep.subr.bf16.mxu0 0
    %154 = vmatpush1.bf16.msra.mxu0 0
    %155 = vmatprep.subr.bf16.mxu0 0
    %156 = vmatpush1.bf16.msra.mxu0 0
    %157 = vmatprep.subr.bf16.mxu0 0
    %158 = vmatpush1.bf16.msra.mxu0 0
    %159 = vmatprep.subr.bf16.mxu0 0
    %160 = vmatpush1.bf16.msra.mxu0 0
    %161 = vmatprep.subr.bf16.mxu0 0
    %162 = vmatpush1.bf16.msra.mxu0 0
    %163 = vmatprep.subr.bf16.mxu0 0
    %164 = vmatpush1.bf16.msra.mxu0 0
    %165 = vmatprep.subr.bf16.mxu0 0
    %166 = vmatpush1.bf16.msra.mxu0 0
    %167 = vmatprep.subr.bf16.mxu0 0
    %168 = vmatpush1.bf16.msra.mxu0 0
    %169 = vmatprep.subr.bf16.mxu0 0
    %170 = vmatpush1.bf16.msra.mxu0 0
    %171 = vmatprep.subr.bf16.mxu0 0
    %172 = vmatpush1.bf16.msra.mxu0 0
    %173 = vmatprep.mubr.bf16.mxu0 0
    %174 = vmatmul.mubr.bf16.gmra.mrb[0].mxu0 %v139
    %v175 = vpop.f32.mrb[0].mxu0
    %v176 = vadd.f32 %v123, %v175
    %v177 = vpop.f32.mrb[0].mxu0
    %v178 = vpop.f32.mrb[0].mxu0
    %v179 = vpop.f32.mrb[0].mxu0
    %180 = vdwg.mxu0
    %v181 = vmax.f32 %v176, 0.0
    %v182 = vld [vmem:[%s3] sm:$0x1]
    %v183 = vld [vmem:[#allocation7] sm:$0x1]
    %v184 = vsel %vm137, %v181, 0.0
    %185 = vadd.xlane.f32.xlu0 %v184
    %v186 = vpop.xlane.xlu0 %185
    %v187 = vrcp.pop 32.0
    %v188 = vmul.f32 %v186, %v187
    %v189 = vsub.f32 %v181, %v188
    %v190 = vmul.f32 %v189, %v189
    %v191 = vsel %vm137, %v190, 0.0
    %192 = vadd.xlane.f32.xlu0 %v191
    %v193 = vpop.xlane.xlu0 %192
    %v194 = vmul.f32 %v193, %v187
    %v195 = vadd.f32 %v194, 1e-05
    %v196 = vrsqrt.pop %v195
    %v197 = vmul.f32 %v189, %v196
    %v199 = vlaneseq
    %v200 = vshrl.u32 %v199, 7
    %v201 = vsub.s32 0, %v200
    %v202 = vrot.slane %v182, %v201
    %v204 = vmul.f32 %v197, %v202
    %v206 = vlaneseq
    %v207 = vshrl.u32 %v206, 7
    %v208 = vsub.s32 0, %v207
    %v209 = vrot.slane %v183, %v208
    %v211 = vadd.f32 %v204, %v209
    %v212 = vpack.c.bf16 %v211, %v211
    %v213 = vld [vmem:[%s5] sm:$0xf]
    %v214 = vld [vmem:[%s5 + $0x4] sm:$0xf]
    %v215 = vld [vmem:[%s5 + $0x8] sm:$0xf]
    %v216 = vld [vmem:[%s5 + $0xc] sm:$0xf]
    %v217 = vld [vmem:[#allocation8] sm:$0x1]
    %v219 = vlaneseq
    %v220 = vshrl.u32 %v219, 7
    %v221 = vsub.s32 0, %v220
    %v222 = vrot.slane %v217, %v221
    %v228 = vunpack.c.l.b16 %v213
    %v229 = vunpack.c.l.b16 %v214
    %v230 = vunpack.c.l.b16 %v215
    %v231 = vunpack.c.l.b16 %v216
    %v232 = vpack.c.b16 %v229, %v228
    %v233 = vpack.c.b16 %v231, %v230
    %v237 = vsel %vm137, %v212, 0
    %239 = vmatprep.subr.bf16.mxu0 0
    %240 = vmatpush1.bf16.msra.mxu0 %v232
    %241 = vmatprep.subr.bf16.mxu0 0
    %242 = vmatpush1.bf16.msra.mxu0 %v233
    %243 = vmatprep.subr.bf16.mxu0 0
    %244 = vmatpush1.bf16.msra.mxu0 0
    %245 = vmatprep.subr.bf16.mxu0 0
    %246 = vmatpush1.bf16.msra.mxu0 0
    %247 = vmatprep.subr.bf16.mxu0 0
    %248 = vmatpush1.bf16.msra.mxu0 0
    %249 = vmatprep.subr.bf16.mxu0 0
    %250 = vmatpush1.bf16.msra.mxu0 0
    %251 = vmatprep.subr.bf16.mxu0 0
    %252 = vmatpush1.bf16.msra.mxu0 0
    %253 = vmatprep.subr.bf16.mxu0 0
    %254 = vmatpush1.bf16.msra.mxu0 0
    %255 = vmatprep.subr.bf16.mxu0 0
    %256 = vmatpush1.bf16.msra.mxu0 0
    %257 = vmatprep.subr.bf16.mxu0 0
    %258 = vmatpush1.bf16.msra.mxu0 0
    %259 = vmatprep.subr.bf16.mxu0 0
    %260 = vmatpush1.bf16.msra.mxu0 0
    %261 = vmatprep.subr.bf16.mxu0 0
    %262 = vmatpush1.bf16.msra.mxu0 0
    %263 = vmatprep.subr.bf16.mxu0 0
    %264 = vmatpush1.bf16.msra.mxu0 0
    %265 = vmatprep.subr.bf16.mxu0 0
    %266 = vmatpush1.bf16.msra.mxu0 0
    %267 = vmatprep.subr.bf16.mxu0 0
    %268 = vmatpush1.bf16.msra.mxu0 0
    %269 = vmatprep.subr.bf16.mxu0 0
    %270 = vmatpush1.bf16.msra.mxu0 0
    %271 = vmatprep.mubr.bf16.mxu0 0
    %272 = vmatmul.mubr.bf16.gmra.mrb[0].mxu0 %v237
    %v273 = vpop.f32.mrb[0].mxu0
    %v274 = vadd.f32 %v222, %v273
    %v275 = vpop.f32.mrb[0].mxu0
    %v276 = vpop.f32.mrb[0].mxu0
    %v277 = vpop.f32.mrb[0].mxu0
    %278 = vdwg.mxu0
    %v279 = vmax.f32 %v274, 0.0
    %v280 = vld [vmem:[#allocation10] sm:$0x1]
    %v281 = vld [vmem:[#allocation11] sm:$0x1]
    %v282 = vsel %vm137, %v279, 0.0
    %283 = vadd.xlane.f32.xlu0 %v282
    %v284 = vpop.xlane.xlu0 %283
    %v285 = vmul.f32 %v284, %v187
    %v286 = vsub.f32 %v279, %v285
    %v287 = vmul.f32 %v286, %v286
    %v288 = vsel %vm137, %v287, 0.0
    %289 = vadd.xlane.f32.xlu0 %v288
    %v290 = vpop.xlane.xlu0 %289
    %v291 = vmul.f32 %v290, %v187
    %v292 = vadd.f32 %v291, 1e-05
    %v293 = vrsqrt.pop %v292
    %v294 = vmul.f32 %v286, %v293
    %v296 = vlaneseq
    %v297 = vshrl.u32 %v296, 7
    %v298 = vsub.s32 0, %v297
    %v299 = vrot.slane %v280, %v298
    %v301 = vmul.f32 %v294, %v299
    %v303 = vlaneseq
    %v304 = vshrl.u32 %v303, 7
    %v305 = vsub.s32 0, %v304
    %v306 = vrot.slane %v281, %v305
    %v308 = vadd.f32 %v301, %v306
    %v309 = vpack.c.bf16 %v308, %v308
    %v310 = vld [vmem:[%s9] sm:$0xf]
    %v311 = vld [vmem:[%s9 + $0x4] sm:$0xf]
    %v312 = vld [vmem:[%s9 + $0x8] sm:$0xf]
    %v313 = vld [vmem:[%s9 + $0xc] sm:$0xf]
    %v314 = vld [vmem:[%s10] sm:$0x1]
    %v316 = vlaneseq
    %v317 = vshrl.u32 %v316, 7
    %v318 = vsub.s32 0, %v317
    %v319 = vrot.slane %v314, %v318
    %v325 = vunpack.c.l.b16 %v310
    %v326 = vunpack.c.l.b16 %v311
    %v327 = vunpack.c.l.b16 %v312
    %v328 = vunpack.c.l.b16 %v313
    %v329 = vpack.c.b16 %v326, %v325
    %v330 = vpack.c.b16 %v328, %v327
    %v334 = vsel %vm137, %v309, 0
    %336 = vmatprep.subr.bf16.mxu0 0
    %337 = vmatpush1.bf16.msra.mxu0 %v329
    %338 = vmatprep.subr.bf16.mxu0 0
    %339 = vmatpush1.bf16.msra.mxu0 %v330
    %340 = vmatprep.subr.bf16.mxu0 0
    %341 = vmatpush1.bf16.msra.mxu0 0
    %342 = vmatprep.subr.bf16.mxu0 0
    %343 = vmatpush1.bf16.msra.mxu0 0
    %344 = vmatprep.subr.bf16.mxu0 0
    %345 = vmatpush1.bf16.msra.mxu0 0
    %346 = vmatprep.subr.bf16.mxu0 0
    %347 = vmatpush1.bf16.msra.mxu0 0
    %348 = vmatprep.subr.bf16.mxu0 0
    %349 = vmatpush1.bf16.msra.mxu0 0
    %350 = vmatprep.subr.bf16.mxu0 0
    %351 = vmatpush1.bf16.msra.mxu0 0
    %352 = vmatprep.subr.bf16.mxu0 0
    %353 = vmatpush1.bf16.msra.mxu0 0
    %354 = vmatprep.subr.bf16.mxu0 0
    %355 = vmatpush1.bf16.msra.mxu0 0
    %356 = vmatprep.subr.bf16.mxu0 0
    %357 = vmatpush1.bf16.msra.mxu0 0
    %358 = vmatprep.subr.bf16.mxu0 0
    %359 = vmatpush1.bf16.msra.mxu0 0
    %360 = vmatprep.subr.bf16.mxu0 0
    %361 = vmatpush1.bf16.msra.mxu0 0
    %362 = vmatprep.subr.bf16.mxu0 0
    %363 = vmatpush1.bf16.msra.mxu0 0
    %364 = vmatprep.subr.bf16.mxu0 0
    %365 = vmatpush1.bf16.msra.mxu0 0
    %366 = vmatprep.subr.bf16.mxu0 0
    %367 = vmatpush1.bf16.msra.mxu0 0
    %368 = vmatprep.mubr.bf16.mxu0 0
    %369 = vmatmul.mubr.bf16.gmra.mrb[0].mxu0 %v334
    %v370 = vpop.f32.mrb[0].mxu0
    %v371 = vadd.f32 %v319, %v370
    %v372 = vpop.f32.mrb[0].mxu0
    %v373 = vpop.f32.mrb[0].mxu0
    %v374 = vpop.f32.mrb[0].mxu0
    %375 = vdwg.mxu0
    %376 = vst [vmem:[#allocation13] sm:$0xff] %v371
    // Predicated region
    $region70: #{tpu_custom_call.1} parent=1 // pred_check
      _
    $region71: #{tpu_custom_call.1} parent=1 // pred_check_branch
      %378 = sbr.rel (0) target = $region73
    $region72: #{tpu_custom_call.1} parent=1 // pred_region
      %s380 = ssub.s32 128, 128
      %381 = vsyncadd [#allocation4], %s380
      %s383 = sshll.u32 [#allocation13], 4
      %s384 = int_to_ptr.vmem [resolvable:$true] %s383
      %386 = dma.vmem_to_hbm [thread:$0]  %s384, 128, %s11, [#allocation4]
    $region73: #{tpu_custom_call.1} parent=1 // pred_fallthru
      _
    // Predicated region
    $region74: #{tpu_custom_call.1} parent=1 // pred_check
      _
    $region75: #{tpu_custom_call.1} parent=1 // pred_check_branch
      %388 = sbr.rel (0) target = $region77
    $region76: #{tpu_custom_call.1} parent=1 // pred_region
      %389 = dma.done [#allocation4], 128
    $region77: #{tpu_custom_call.1} parent=1 // pred_fallthru
      _
    %390 = vsyncpa [#allocation3], 1
    %391 = vsyncpa [#allocation6], 1
    %392 = vsyncpa [#allocation9], 1
    %393 = vsyncpa [#allocation12], 1
    %394 = vsyncpa [#allocation4], 1

</llo_original>
